<compile_context>
chip_gen: v6e
topology: v6e:2x2x1
jax: 0.10.0
libtpu: 0.0.40
codegen_flags: <defaults>
</compile_context>

<pallas_src>
import jax
import jax.numpy as jnp
from jax.experimental import pallas as pl
from jax.experimental.pallas import tpu as pltpu


def _round_up(n, m):
    return ((n + m - 1) // m) * m


def _linear_softmax_kernel(x_ref, w_ref, b_ref, o_ref):
    # Fused: MXU matmul (bf16 in, f32 acc) + bias + numerically-stable softmax over last axis.
    x = x_ref[...].astype(jnp.bfloat16)                               # (tb, D_in)
    z = jnp.dot(x, w_ref[...], preferred_element_type=jnp.float32)    # (tb, D_out) f32
    z = z + b_ref[...]
    z = z - jnp.max(z, axis=-1, keepdims=True)
    e = jnp.exp(z)
    denom = jnp.sum(e, axis=-1, keepdims=True)
    # Exact divide: rows sum to 1 to f32 rounding (approx reciprocal was only ~1e-3 accurate).
    o_ref[...] = (e / denom).astype(o_ref.dtype)


def softmax_wrapping(x, w, b, *, tb=512):
    """softmax(x @ w + b, axis=1). x: [B, D_in], w: [D_in, D_out], b: [D_out]."""
    B, D_in = x.shape
    D_out = w.shape[1]

    # Batch tile: multiple of 8 (f32 sublane), clamped for tiny B. 512 keeps us near the HBM
    # roofline while giving enough grid steps for good 2-TC load balance on v7x.
    tb_eff = _round_up(min(tb, _round_up(B, 8)), 8)
    grid = (pl.cdiv(B, tb_eff),)  # Pallas clips the partial last block (softmax is per-row).

    w_bf = w.astype(jnp.bfloat16)          # resident weights in VMEM (~1 KiB)
    b2 = b.reshape(1, D_out).astype(jnp.float32)

    itemsize = int(jnp.dtype(x.dtype).itemsize)
    cost = pl.CostEstimate(
        flops=int(2 * B * D_in * D_out),
        transcendentals=int(B * D_out),
        bytes_accessed=int(B * D_in * itemsize + B * D_out * itemsize
                           + D_in * D_out * 2 + D_out * 4),
    )

    return pl.pallas_call(
        _linear_softmax_kernel,
        out_shape=jax.ShapeDtypeStruct((B, D_out), x.dtype),
        grid_spec=pltpu.PrefetchScalarGridSpec(
            num_scalar_prefetch=0,
            grid=grid,
            in_specs=[
                pl.BlockSpec((tb_eff, D_in), lambda i: (i, 0)),    # batch tile of x
                pl.BlockSpec((D_in, D_out), lambda i: (0, 0)),     # resident weights
                pl.BlockSpec((1, D_out), lambda i: (0, 0)),        # resident bias
            ],
            # Narrow output: last dim == full array dim, so exempt from the 128-lane rule.
            out_specs=pl.BlockSpec((tb_eff, D_out), lambda i: (i, 0)),
        ),
        compiler_params=pltpu.CompilerParams(
            dimension_semantics=("parallel",),   # batch axis shards across v7x's 2 TCs
        ),
        cost_estimate=cost,
    )(x, w_bf, b2)


if __name__ == "__main__":
    # Small shapes implied by the forward: [B, D_in] input into Linear(32 -> 16).
    B, D_in, D_out = 8, 32, 16

    key = jax.random.PRNGKey(0)
    kx, kw, kb = jax.random.split(key, 3)

    x = jax.random.normal(kx, (B, D_in), dtype=jnp.float32)
    # torch stores weight as [out, in]; we keep the pre-transposed [in, out] layout.
    w = jax.random.normal(kw, (D_in, D_out), dtype=jnp.float32) * 0.1
    b = jax.random.normal(kb, (D_out,), dtype=jnp.float32) * 0.1

    out = jax.block_until_ready(softmax_wrapping(x, w, b))
    ref = jax.nn.softmax(x @ w + b, axis=1)
    assert out.shape == (B, D_out)
    # Tolerance covers the bf16 MXU inputs (f32 accumulate); softmax itself is exact f32.
    assert jnp.allclose(out, ref, atol=5e-3, rtol=5e-3)
    # Exact divide -> rows sum to 1 to f32 rounding.
    assert jnp.allclose(jnp.sum(out, axis=1), 1.0, atol=1e-3)

    # Also exercise the multi-step grid + partial last block path (B not a multiple of tb or 8).
    B2 = 4100
    x2 = jax.random.normal(jax.random.PRNGKey(1), (B2, D_in), dtype=jnp.float32)
    out2 = jax.block_until_ready(softmax_wrapping(x2, w, b))
    ref2 = jax.nn.softmax(x2 @ w + b, axis=1)
    assert out2.shape == (B2, D_out)
    assert jnp.allclose(out2, ref2, atol=5e-3, rtol=5e-3)
    assert jnp.allclose(jnp.sum(out2, axis=1), 1.0, atol=1e-3)

    print("KERNEL_OK")
</pallas_src>

<mosaic_0001>
module attributes {stable_mosaic.version = 11 : i64} {
  func.func @_linear_softmax_kernel(%arg0: i32, %arg1: memref<8x32xf32, #tpu.memory_space<vmem>>, %arg2: memref<32x16xbf16, #tpu.memory_space<vmem>>, %arg3: memref<1x16xf32, #tpu.memory_space<vmem>>, %arg4: memref<8x16xf32, #tpu.memory_space<vmem>>) attributes {dimension_semantics = [#tpu.dimension_semantics<parallel>], iteration_bounds = array<i64: 1>, scalar_prefetch = 0 : i64, scratch_operands = 0 : i64, tpu.core_type = #tpu.core_type<tc>, window_params = [{transform_indices = @transform_0, window_bounds = array<i64: 8, 32>}, {pipeline_mode = #tpu.pipeline_mode<synchronous>, transform_indices = @transform_1, window_bounds = array<i64: 32, 16>}, {pipeline_mode = #tpu.pipeline_mode<synchronous>, transform_indices = @transform_2, window_bounds = array<i64: 1, 16>}, {transform_indices = @transform_3, window_bounds = array<i64: 8, 16>}]} {
    %c0 = arith.constant 0 : index
    %c0_0 = arith.constant 0 : index
    %0 = vector.load %arg1[%c0, %c0_0] : memref<8x32xf32, #tpu.memory_space<vmem>>, vector<8x32xf32>
    %1 = arith.truncf %0 : vector<8x32xf32> to vector<8x32xbf16>
    %c0_1 = arith.constant 0 : index
    %c0_2 = arith.constant 0 : index
    %2 = vector.load %arg2[%c0_1, %c0_2] : memref<32x16xbf16, #tpu.memory_space<vmem>>, vector<32x16xbf16>
    %cst = arith.constant dense<0.000000e+00> : vector<8x16xf32>
    %3 = tpu.matmul %1, %2, %cst {dimension_numbers = #tpu.dot_dimension_numbers<[1], [0], [0], [1], [0, 0, 1, 1], [], []>} : vector<8x32xbf16>, vector<32x16xbf16>, vector<8x16xf32> -> vector<8x16xf32>
    %c0_3 = arith.constant 0 : index
    %c0_4 = arith.constant 0 : index
    %4 = vector.load %arg3[%c0_3, %c0_4] : memref<1x16xf32, #tpu.memory_space<vmem>>, vector<1x16xf32>
    %5 = vector.broadcast %4 : vector<1x16xf32> to vector<8x16xf32>
    %6 = arith.addf %3, %5 : vector<8x16xf32>
    %cst_5 = arith.constant dense<0xFF800000> : vector<8xf32>
    %7 = vector.multi_reduction <maximumf>, %6, %cst_5 [1] : vector<8x16xf32> to vector<8xf32>
    %8 = vector.shape_cast %7 : vector<8xf32> to vector<8x1xf32>
    %9 = vector.broadcast %8 : vector<8x1xf32> to vector<8x16xf32>
    %10 = arith.subf %6, %9 : vector<8x16xf32>
    %11 = math.exp %10 : vector<8x16xf32>
    %cst_6 = arith.constant dense<0.000000e+00> : vector<8xf32>
    %12 = vector.multi_reduction <add>, %11, %cst_6 [1] : vector<8x16xf32> to vector<8xf32>
    %13 = vector.shape_cast %12 : vector<8xf32> to vector<8x1xf32>
    %14 = vector.broadcast %13 : vector<8x1xf32> to vector<8x16xf32>
    %15 = arith.divf %11, %14 : vector<8x16xf32>
    %c0_7 = arith.constant 0 : index
    %c0_8 = arith.constant 0 : index
    %16 = vector.load %arg4[%c0_7, %c0_8] : memref<8x16xf32, #tpu.memory_space<vmem>>, vector<8x16xf32>
    tpu.vector_store %arg4[%c0_7, %c0_8], %15 {strides = array<i32>} : memref<8x16xf32, #tpu.memory_space<vmem>>, vector<8x16xf32>,
    return
  }
  func.func @transform_0(%arg0: i32) -> (i32, i32) {
    %c0_i32 = arith.constant 0 : i32
    %c0_i32_0 = arith.constant 0 : i32
    return %arg0, %c0_i32 : i32, i32
  }
  func.func @transform_1(%arg0: i32) -> (i32, i32) {
    %c0_i32 = arith.constant 0 : i32
    %c0_i32_0 = arith.constant 0 : i32
    %c0_i32_1 = arith.constant 0 : i32
    return %c0_i32, %c0_i32_0 : i32, i32
  }
  func.func @transform_2(%arg0: i32) -> (i32, i32) {
    %c0_i32 = arith.constant 0 : i32
    %c0_i32_0 = arith.constant 0 : i32
    %c0_i32_1 = arith.constant 0 : i32
    return %c0_i32, %c0_i32_0 : i32, i32
  }
  func.func @transform_3(%arg0: i32) -> (i32, i32) {
    %c0_i32 = arith.constant 0 : i32
    %c0_i32_0 = arith.constant 0 : i32
    return %arg0, %c0_i32 : i32, i32
  }
}

</mosaic_0001>

<llo_original>
// kernel: tpu_custom_call.1
$region0: #{tpu_custom_call.1}
  #allocation0 [shape = 'u32[]', space=smem, size = 0x4, offset = 0x4, fixed_abs, tag = 'smem constant byte address 0x4 - core index']
  #allocation1 [shape = 'u32[144,128]{1,0:T(1,128)}', space=vmem, size = 0x12000, scoped, tag = 'internal scratch']
  %s0 = inlined_call_operand.vmem [shape: f32[8,32], index: 0, kind: input, shape index: {}]
  %s1 = inlined_call_operand.vmem [shape: bf16[32,16], index: 1, kind: input, shape index: {}]
  %s2 = inlined_call_operand.vmem [shape: f32[1,16], index: 2, kind: input, shape index: {}]
  %s3 = inlined_call_operand.hbm [shape: f32[8,16], index: 3, kind: output, shape index: {}]
  %s4 = sld [smem:[#allocation0]]
  $region22: #{tpu_custom_call.1} parent=0
    _
  %s6 = ssub.s32 1, %s4
  %s7 = scalar_select 0, %s6, %s4
  $region1: #{tpu_custom_call.1} parent=0
    #allocation2 [shape = 'u8[4096]{0}', space=vmem, size = 0x1000, scoped, tag = 'output window, operand 0, single buffered']
    #allocation3 [shape = 's32[1]{0}', space=sflag, size = 0x4, scoped, tag = 'scoped memory for tpu_custom_call.1']
    %8 = vsyncpa [#allocation3], 0
    // Predicated region
    $region2: #{tpu_custom_call.1} parent=1 // pred_check
      _
    $region3: #{tpu_custom_call.1} parent=1 // pred_check_branch
      %10 = sbr.rel (0) target = $region5
    $region4: #{tpu_custom_call.1} parent=1 // pred_region
      _
    $region5: #{tpu_custom_call.1} parent=1 // pred_fallthru
      _
    // Predicated region
    $region6: #{tpu_custom_call.1} parent=1 // pred_check
      _
    $region7: #{tpu_custom_call.1} parent=1 // pred_check_branch
      %12 = sbr.rel (0) target = $region9
    $region8: #{tpu_custom_call.1} parent=1 // pred_region
      _
    $region9: #{tpu_custom_call.1} parent=1 // pred_fallthru
      _
    // Predicated region
    $region10: #{tpu_custom_call.1} parent=1 // pred_check
      _
    $region11: #{tpu_custom_call.1} parent=1 // pred_check_branch
      %14 = sbr.rel (0) target = $region13
    $region12: #{tpu_custom_call.1} parent=1 // pred_region
      _
    $region13: #{tpu_custom_call.1} parent=1 // pred_fallthru
      _
    %v16 = vld [vmem:[%s0] sm:$0xff]
    %v17 = vpack.c.bf16 %v16, %v16
    %v18 = vld [vmem:[%s1] sm:$0xf]
    %v19 = vld [vmem:[%s1 + $0x4] sm:$0xf]
    %v20 = vld [vmem:[%s1 + $0x8] sm:$0xf]
    %v21 = vld [vmem:[%s1 + $0xc] sm:$0xf]
    %v22 = vld [vmem:[%s2] sm:$0x1]
    %v24 = vlaneseq
    %v25 = vshrl.u32 %v24, 7
    %v26 = vsub.s32 0, %v25
    %v27 = vrot.slane %v22, %v26
    %v33 = vunpack.c.l.b16 %v18
    %v34 = vunpack.c.l.b16 %v19
    %v35 = vunpack.c.l.b16 %v20
    %v36 = vunpack.c.l.b16 %v21
    %v37 = vpack.c.b16 %v34, %v33
    %v38 = vpack.c.b16 %v36, %v35
    %vm41 = vcmask 261120
    %v43 = vsel %vm41, %v17, 0
    %45 = vmatprep.subr.bf16.mxu0 0
    %46 = vmatpush1.bf16.msra.mxu0 0
    %47 = vmatprep.subr.bf16.mxu0 0
    %48 = vmatpush1.bf16.msra.mxu0 0
    %49 = vmatprep.subr.bf16.mxu0 0
    %50 = vmatpush1.bf16.msra.mxu0 0
    %51 = vmatprep.subr.bf16.mxu0 0
    %52 = vmatpush1.bf16.msra.mxu0 0
    %53 = vmatprep.subr.bf16.mxu0 0
    %54 = vmatpush1.bf16.msra.mxu0 0
    %55 = vmatprep.subr.bf16.mxu0 0
    %56 = vmatpush1.bf16.msra.mxu0 0
    %57 = vmatprep.subr.bf16.mxu0 0
    %58 = vmatpush1.bf16.msra.mxu0 %v38
    %59 = vmatprep.subr.bf16.mxu0 0
    %60 = vmatpush1.bf16.msra.mxu0 %v37
    %61 = vmatprep.subr.bf16.mxu0 0
    %62 = vmatpush2.bf16.msra.mxu0 0
    %63 = vmatprep.subr.bf16.mxu0 0
    %64 = vmatpush2.bf16.msra.mxu0 0
    %65 = vmatprep.subr.bf16.mxu0 0
    %66 = vmatpush2.bf16.msra.mxu0 0
    %67 = vmatprep.subr.bf16.mxu0 0
    %68 = vmatpush2.bf16.msra.mxu0 0
    %69 = vmatprep.subr.bf16.mxu0 0
    %70 = vmatpush2.bf16.msra.mxu0 0
    %71 = vmatprep.subr.bf16.mxu0 0
    %72 = vmatpush2.bf16.msra.mxu0 0
    %73 = vmatprep.subr.bf16.mxu0 0
    %74 = vmatpush2.bf16.msra.mxu0 0
    %75 = vmatprep.subr.bf16.mxu0 0
    %76 = vmatpush2.bf16.msra.mxu0 0
    %77 = vmatprep.mubr.bf16.mxu0 0
    %78 = vmatmul.mubr.bf16.gmra.mxu0 %v43
    %v79 = vpop.f32.mrf.mxu0
    %v80 = vadd.f32 %v27, %v79
    %v81 = vpop.f32.mrf.mxu0
    %v82 = vpop.f32.mrf.mxu0
    %v83 = vpop.f32.mrf.mxu0
    %84 = vdwg.mxu0
    %vm85 = vcmask 130048
    %v86 = vsel %vm85, %v80, -inf
    %87 = vmax.xlane.f32.xlu0 %v86
    %v88 = vpop.xlane.xlu0 %87
    %v89 = vsub.f32 %v80, %v88
    %v90 = vmul.f32 %v89, 1.442695
    %v91 = vpow.pop %v90
    %v92 = vsel %vm85, %v91, 0.0
    %93 = vadd.xlane.f32.xlu0 %v92
    %v94 = vpop.xlane.xlu0 %93
    %v95 = vrcp.pop %v94
    %v96 = vmul.f32 %v91, %v95
    %97 = vst.msk [vmem:[#allocation2] sm:$0xff] %vm85, %v96
    // Predicated region
    $region14: #{tpu_custom_call.1} parent=1 // pred_check
      _
    $region15: #{tpu_custom_call.1} parent=1 // pred_check_branch
      %99 = sbr.rel (0) target = $region17
    $region16: #{tpu_custom_call.1} parent=1 // pred_region
      %s101 = ssub.s32 128, 128
      %102 = vsyncadd [#allocation3], %s101
      %s104 = sshll.u32 [#allocation2], 4
      %s105 = int_to_ptr.vmem [resolvable:$true] %s104
      %107 = dma.vmem_to_hbm [thread:$0]  %s105, 128, %s3, [#allocation3]
    $region17: #{tpu_custom_call.1} parent=1 // pred_fallthru
      _
    // Predicated region
    $region18: #{tpu_custom_call.1} parent=1 // pred_check
      _
    $region19: #{tpu_custom_call.1} parent=1 // pred_check_branch
      %109 = sbr.rel (0) target = $region21
    $region20: #{tpu_custom_call.1} parent=1 // pred_region
      %110 = dma.done [#allocation3], 128
    $region21: #{tpu_custom_call.1} parent=1 // pred_fallthru
      _
    %111 = vsyncpa [#allocation3], 1

</llo_original>
